<compile_context>
chip_gen: v6e
topology: v6e:2x2x1
jax: 0.10.0
libtpu: 0.0.40
codegen_flags: <defaults>
</compile_context>

<pallas_src>
import jax
import jax.numpy as jnp
from jax import lax
from jax.experimental import pallas as pl
from jax.experimental.pallas import tpu as pltpu


# ----------------------------------------------------------------------------
# small helpers
# ----------------------------------------------------------------------------
def _round_up(x, m):
    return (x + m - 1) // m * m


def _tile_dim(d, target, mult):
    """Pick (tile, padded_extent) for dim `d`; tile is a multiple of `mult`
    and divides the padded extent. `target` must be a multiple of `mult`."""
    if d <= target:
        t = _round_up(max(d, 1), mult)
        return t, t
    return target, _round_up(d, target)


def _bn_fold(gamma, beta, mean, var, eps=1e-5):
    """Fold eval-mode BatchNorm into a per-channel affine (scale, bias)."""
    scale = gamma / jnp.sqrt(var + eps)
    bias = beta - mean * scale
    return scale, bias


# ----------------------------------------------------------------------------
# fused matmul kernel:  out = [mask *] relu?( A@B * scale + bias [+ residual] )
# ----------------------------------------------------------------------------
def _make_fused_kernel(has_mask, has_residual):
    def kernel(*refs):
        a_ref, b_ref, scale_ref, bias_ref = refs[0], refs[1], refs[2], refs[3]
        idx = 4
        mask_ref = None
        res_ref = None
        if has_mask:
            mask_ref = refs[idx]
            idx += 1
        if has_residual:
            res_ref = refs[idx]
            idx += 1
        o_ref, acc_ref = refs[idx], refs[idx + 1]

        k = pl.program_id(2)

        @pl.when(k == 0)
        def _():
            acc_ref[...] = jnp.zeros_like(acc_ref)

        acc_ref[...] += jnp.dot(a_ref[...], b_ref[...],
                                preferred_element_type=jnp.float32)

        @pl.when(k == pl.num_programs(2) - 1)
        def _():
            y = acc_ref[...] * scale_ref[...] + bias_ref[...]
            if has_residual:
                y = y + res_ref[...].astype(jnp.float32)
            if has_mask:
                y = mask_ref[...].astype(jnp.float32) * jnp.maximum(y, 0.0)
            o_ref[...] = y.astype(o_ref.dtype)

    return kernel


def _fused_matmul(a, b, scale, bias, mask=None, residual=None):
    """out = [mask *] relu?( a @ b * scale + bias [+ residual] )

    a: (M, K), b: (K, N), scale/bias/mask: (N,), residual: (M, N).
    relu+mask applied only when `mask` is not None (fused M_relu epilogue).
    """
    M, K = a.shape
    K2, N = b.shape
    assert K == K2
    out_dtype = a.dtype

    tm, Mp = _tile_dim(M, 256, 8)
    tn, Np = _tile_dim(N, 256, 128)
    tk, Kp = _tile_dim(K, 512, 128)

    a_p = jnp.pad(a, ((0, Mp - M), (0, Kp - K)))
    b_p = jnp.pad(b, ((0, Kp - K), (0, Np - N)))
    scale_p = jnp.pad(scale.reshape(1, N).astype(jnp.float32),
                      ((0, 0), (0, Np - N)))
    bias_p = jnp.pad(bias.reshape(1, N).astype(jnp.float32),
                     ((0, 0), (0, Np - N)))

    inputs = [a_p, b_p, scale_p, bias_p]
    in_specs = [
        pl.BlockSpec((tm, tk), lambda i, j, k: (i, k)),
        pl.BlockSpec((tk, tn), lambda i, j, k: (k, j)),
        pl.BlockSpec((1, tn), lambda i, j, k: (0, j)),
        pl.BlockSpec((1, tn), lambda i, j, k: (0, j)),
    ]
    if mask is not None:
        mask_p = jnp.pad(mask.reshape(1, N).astype(jnp.float32),
                         ((0, 0), (0, Np - N)))
        inputs.append(mask_p)
        in_specs.append(pl.BlockSpec((1, tn), lambda i, j, k: (0, j)))
    if residual is not None:
        res_p = jnp.pad(residual, ((0, Mp - M), (0, Np - N)))
        inputs.append(res_p)
        in_specs.append(pl.BlockSpec((tm, tn), lambda i, j, k: (i, j)))

    kernel = _make_fused_kernel(has_mask=mask is not None,
                                has_residual=residual is not None)

    out = pl.pallas_call(
        kernel,
        out_shape=jax.ShapeDtypeStruct((Mp, Np), out_dtype),
        grid=(Mp // tm, Np // tn, Kp // tk),
        in_specs=in_specs,
        out_specs=pl.BlockSpec((tm, tn), lambda i, j, k: (i, j)),
        scratch_shapes=[pltpu.VMEM((tm, tn), jnp.float32)],
        compiler_params=pltpu.CompilerParams(
            dimension_semantics=("parallel", "parallel", "arbitrary")),
    )(*inputs)
    return out[:M, :N]


# ----------------------------------------------------------------------------
# standalone M_relu (tiled, lane-dense) — for un-fused call sites
# ----------------------------------------------------------------------------
def _mask_relu_kernel(x_ref, m_ref, o_ref):
    o_ref[...] = m_ref[...] * jnp.maximum(x_ref[...], 0.0)


def _m_relu_2d(x2d, mask_row):
    R, L = x2d.shape
    tr, Rp = _tile_dim(R, 256, 8)
    tl, Lp = _tile_dim(L, 2048, 128)
    x_p = jnp.pad(x2d, ((0, Rp - R), (0, Lp - L)))
    m_p = jnp.pad(mask_row.astype(x2d.dtype), ((0, 0), (0, Lp - L)))
    out = pl.pallas_call(
        _mask_relu_kernel,
        out_shape=jax.ShapeDtypeStruct((Rp, Lp), x2d.dtype),
        grid=(Rp // tr, Lp // tl),
        in_specs=[pl.BlockSpec((tr, tl), lambda i, j: (i, j)),
                  pl.BlockSpec((1, tl), lambda i, j: (0, j))],
        out_specs=pl.BlockSpec((tr, tl), lambda i, j: (i, j)),
        compiler_params=pltpu.CompilerParams(
            dimension_semantics=("parallel", "parallel")),
    )(x_p, m_p)
    return out[:R, :L]


def m_relu(x, active):
    """Standalone M_relu.forward: active.view(1,-1[,1,1]) * relu(x)."""
    if x.ndim == 2:
        N, C = x.shape
        return _m_relu_2d(x, active.reshape(1, C))
    elif x.ndim == 4:
        N, C, H, W = x.shape
        x2d = x.reshape(N, C * H * W)                      # lane-dense layout
        m = jnp.repeat(active, H * W).reshape(1, C * H * W)
        return _m_relu_2d(x2d, m).reshape(N, C, H, W)
    else:
        raise ValueError("M_relu only supports 2D or 4D inputs")


# ----------------------------------------------------------------------------
# conv glue (im2col) + M_BasicBlock forward
# ----------------------------------------------------------------------------
def _im2col_3x3(x_nchw, stride):
    """NCHW -> (N*Ho*Wo, 9*C) patches (kh, kw, cin column order), pad=1."""
    N, C, H, W = x_nchw.shape
    x = jnp.transpose(x_nchw, (0, 2, 3, 1))                 # NHWC
    x = jnp.pad(x, ((0, 0), (1, 1), (1, 1), (0, 0)))
    Ho = (H + 2 - 3) // stride + 1
    Wo = (W + 2 - 3) // stride + 1
    cols = []
    for kh in range(3):
        for kw in range(3):
            cols.append(x[:,
                          kh:kh + stride * (Ho - 1) + 1:stride,
                          kw:kw + stride * (Wo - 1) + 1:stride, :])
    patches = jnp.concatenate(cols, axis=-1)                # (N, Ho, Wo, 9C)
    return patches.reshape(N * Ho * Wo, 9 * C), Ho, Wo


def m_basic_block(x, params, stride=1):
    """Pallas forward of M_BasicBlock. x: (N, Cin, H, W) float32 (NCHW)."""
    N, Cin, H, W = x.shape
    Cout = params['conv1_w'].shape[0]

    # stage 1: conv1(3x3, stride) + bn1 + masked ReLU  (fused epilogue)
    a1, Ho, Wo = _im2col_3x3(x, stride)
    w1 = jnp.transpose(params['conv1_w'], (2, 3, 1, 0)).reshape(9 * Cin, Cout)
    s1, b1 = _bn_fold(*params['bn1'])
    h2d = _fused_matmul(a1, w1, s1, b1, mask=params['active1'])

    # shortcut (identity, or conv1x1(stride) + bn fused into one matmul)
    if 'sc_w' in params:
        xs = jnp.transpose(x, (0, 2, 3, 1))[:, ::stride, ::stride, :]
        a_sc = xs.reshape(N * Ho * Wo, Cin)
        w_sc = params['sc_w'].reshape(Cout, Cin).T
        ss, bs = _bn_fold(*params['sc_bn'])
        shortcut2d = _fused_matmul(a_sc, w_sc, ss, bs)       # no relu / mask
    else:
        shortcut2d = jnp.transpose(x, (0, 2, 3, 1)).reshape(N * Ho * Wo, Cout)

    # stage 2: conv2(3x3, 1) + bn2 + residual add + masked ReLU (fused)
    h_nchw = jnp.transpose(h2d.reshape(N, Ho, Wo, Cout), (0, 3, 1, 2))
    a2, _, _ = _im2col_3x3(h_nchw, 1)
    w2 = jnp.transpose(params['conv2_w'], (2, 3, 1, 0)).reshape(9 * Cout, Cout)
    s2, b2 = _bn_fold(*params['bn2'])
    out2d = _fused_matmul(a2, w2, s2, b2, mask=params['active2'],
                          residual=shortcut2d)

    return jnp.transpose(out2d.reshape(N, Ho, Wo, Cout), (0, 3, 1, 2))


# ----------------------------------------------------------------------------
# pure-JAX reference (eval-mode BN) for validation
# ----------------------------------------------------------------------------
def _ref_conv(x, w, stride, pad):
    return lax.conv_general_dilated(
        x, w, window_strides=(stride, stride),
        padding=((pad, pad), (pad, pad)),
        dimension_numbers=('NCHW', 'OIHW', 'NCHW'),
        precision=lax.Precision.HIGHEST)


def _ref_bn(x, bn):
    g, b, m, v = bn
    s = g / jnp.sqrt(v + 1e-5)
    return x * s[None, :, None, None] + (b - m * s)[None, :, None, None]


def ref_block(x, params, stride):
    h = _ref_bn(_ref_conv(x, params['conv1_w'], stride, 1), params['bn1'])
    h = params['active1'][None, :, None, None] * jnp.maximum(h, 0.0)
    out = _ref_bn(_ref_conv(h, params['conv2_w'], 1, 1), params['bn2'])
    if 'sc_w' in params:
        sc = _ref_bn(_ref_conv(x, params['sc_w'], stride, 0), params['sc_bn'])
    else:
        sc = x
    out = out + sc
    return params['active2'][None, :, None, None] * jnp.maximum(out, 0.0)


# ----------------------------------------------------------------------------
# tests
# ----------------------------------------------------------------------------
if __name__ == "__main__":
    root = jax.random.PRNGKey(0)

    def make_bn(key, c):
        k1, k2, k3, k4 = jax.random.split(key, 4)
        gamma = 1.0 + 0.2 * jax.random.normal(k1, (c,), dtype=jnp.float32)
        beta = 0.1 * jax.random.normal(k2, (c,), dtype=jnp.float32)
        mean = 0.1 * jax.random.normal(k3, (c,), dtype=jnp.float32)
        var = 0.5 + jax.random.uniform(k4, (c,), dtype=jnp.float32)
        return (gamma, beta, mean, var)

    def make_block_params(key, cin, cout, stride, active2=None):
        ks = jax.random.split(key, 8)
        p = {
            'conv1_w': 0.1 * jax.random.normal(ks[0], (cout, cin, 3, 3),
                                               dtype=jnp.float32),
            'bn1': make_bn(ks[1], cout),
            'active1': jnp.ones((cout,), dtype=jnp.float32),
            'conv2_w': 0.1 * jax.random.normal(ks[2], (cout, cout, 3, 3),
                                               dtype=jnp.float32),
            'bn2': make_bn(ks[3], cout),
            'active2': (jnp.ones((cout,), dtype=jnp.float32)
                        if active2 is None else active2),
        }
        if stride != 1 or cin != cout:
            p['sc_w'] = 0.1 * jax.random.normal(ks[4], (cout, cin, 1, 1),
                                                dtype=jnp.float32)
            p['sc_bn'] = make_bn(ks[5], cout)
        return p

    k_x1, k_p1, k_x2, k_p2, k_r4, k_r2 = jax.random.split(root, 6)

    # --- test 1: identity shortcut (in_planes == planes, stride 1) ---------
    N, C, H, W = 2, 4, 16, 16
    x1 = jax.random.normal(k_x1, (N, C, H, W), dtype=jnp.float32)
    p1 = make_block_params(k_p1, C, C, 1)
    out1 = jax.block_until_ready(m_basic_block(x1, p1, stride=1))
    ref1 = ref_block(x1, p1, 1)
    assert out1.shape == ref1.shape
    assert jnp.allclose(out1, ref1, atol=1e-3, rtol=1e-3), (
        "basic block (stride 1) mismatch: %e"
        % float(jnp.max(jnp.abs(out1 - ref1))))

    # --- test 2: projection shortcut (stride 2, channel change), masked ch --
    Cin2, Cout2 = 4, 8
    active2 = jnp.ones((Cout2,), dtype=jnp.float32).at[3].set(0.0)
    x2 = jax.random.normal(k_x2, (N, Cin2, H, W), dtype=jnp.float32)
    p2 = make_block_params(k_p2, Cin2, Cout2, 2, active2=active2)
    out2 = jax.block_until_ready(m_basic_block(x2, p2, stride=2))
    ref2 = ref_block(x2, p2, 2)
    assert out2.shape == (N, Cout2, H // 2, W // 2)
    assert jnp.allclose(out2, ref2, atol=1e-3, rtol=1e-3), (
        "basic block (stride 2 + projection) mismatch: %e"
        % float(jnp.max(jnp.abs(out2 - ref2))))

    # --- test 3: standalone M_relu kernel (4D and 2D) -----------------------
    x4 = jax.random.normal(k_r4, (2, 4, 16, 16), dtype=jnp.float32)
    a4 = jnp.ones((4,), dtype=jnp.float32)
    o4 = jax.block_until_ready(m_relu(x4, a4))
    assert jnp.allclose(o4, a4[None, :, None, None] * jnp.maximum(x4, 0.0),
                        atol=1e-6), "standalone M_relu 4D mismatch"

    x2d = jax.random.normal(k_r2, (2, 32), dtype=jnp.float32)
    a2d = jnp.ones((32,), dtype=jnp.float32)
    o2d = jax.block_until_ready(m_relu(x2d, a2d))
    assert jnp.allclose(o2d, a2d[None, :] * jnp.maximum(x2d, 0.0),
                        atol=1e-6), "standalone M_relu 2D mismatch"

    print("KERNEL_OK")
</pallas_src>

<mosaic_0001>
module attributes {stable_mosaic.version = 11 : i64} {
  func.func @kernel(%arg0: i32, %arg1: i32, %arg2: i32, %arg3: memref<256x128xf32, #tpu.memory_space<vmem>>, %arg4: memref<128x128xf32, #tpu.memory_space<vmem>>, %arg5: memref<1x128xf32, #tpu.memory_space<vmem>>, %arg6: memref<1x128xf32, #tpu.memory_space<vmem>>, %arg7: memref<1x128xf32, #tpu.memory_space<vmem>>, %arg8: memref<256x128xf32, #tpu.memory_space<vmem>>, %arg9: memref<256x128xf32, #tpu.memory_space<vmem>>) attributes {dimension_semantics = [#tpu.dimension_semantics<parallel>, #tpu.dimension_semantics<parallel>, #tpu.dimension_semantics<arbitrary>], iteration_bounds = array<i64: 2, 1, 1>, scalar_prefetch = 0 : i64, scratch_operands = 1 : i64, tpu.core_type = #tpu.core_type<tc>, window_params = [{transform_indices = @transform_0, window_bounds = array<i64: 256, 128>}, {transform_indices = @transform_1, window_bounds = array<i64: 128, 128>}, {transform_indices = @transform_2, window_bounds = array<i64: 1, 128>}, {transform_indices = @transform_3, window_bounds = array<i64: 1, 128>}, {transform_indices = @transform_4, window_bounds = array<i64: 1, 128>}, {transform_indices = @transform_5, window_bounds = array<i64: 256, 128>}]} {
    %c0_i32 = arith.constant 0 : i32
    %0 = arith.cmpi eq, %arg2, %c0_i32 : i32
    %1 = arith.extui %0 : i1 to i32
    %c0_i32_0 = arith.constant 0 : i32
    %2 = arith.cmpi ne, %1, %c0_i32_0 : i32
    scf.if %2 {
      %cst_10 = arith.constant 0.000000e+00 : f32
      %12 = vector.broadcast %cst_10 : f32 to vector<256x128xf32>
      %c0_11 = arith.constant 0 : index
      %c0_12 = arith.constant 0 : index
      %13 = vector.load %arg9[%c0_11, %c0_12] : memref<256x128xf32, #tpu.memory_space<vmem>>, vector<256x128xf32>
      tpu.vector_store %arg9[%c0_11, %c0_12], %12 {strides = array<i32>} : memref<256x128xf32, #tpu.memory_space<vmem>>, vector<256x128xf32>,
    } else {
    }
    %c0 = arith.constant 0 : index
    %c0_1 = arith.constant 0 : index
    %3 = vector.load %arg9[%c0, %c0_1] : memref<256x128xf32, #tpu.memory_space<vmem>>, vector<256x128xf32>
    %c0_2 = arith.constant 0 : index
    %c0_3 = arith.constant 0 : index
    %4 = vector.load %arg3[%c0_2, %c0_3] : memref<256x128xf32, #tpu.memory_space<vmem>>, vector<256x128xf32>
    %c0_4 = arith.constant 0 : index
    %c0_5 = arith.constant 0 : index
    %5 = vector.load %arg4[%c0_4, %c0_5] : memref<128x128xf32, #tpu.memory_space<vmem>>, vector<128x128xf32>
    %cst = arith.constant dense<0.000000e+00> : vector<256x128xf32>
    %6 = tpu.matmul %4, %5, %cst {dimension_numbers = #tpu.dot_dimension_numbers<[1], [0], [0], [1], [0, 0, 1, 1], [], []>} : vector<256x128xf32>, vector<128x128xf32>, vector<256x128xf32> -> vector<256x128xf32>
    %7 = arith.addf %3, %6 : vector<256x128xf32>
    %c0_6 = arith.constant 0 : index
    %c0_7 = arith.constant 0 : index
    %8 = vector.load %arg9[%c0_6, %c0_7] : memref<256x128xf32, #tpu.memory_space<vmem>>, vector<256x128xf32>
    tpu.vector_store %arg9[%c0_6, %c0_7], %7 {strides = array<i32>} : memref<256x128xf32, #tpu.memory_space<vmem>>, vector<256x128xf32>,
    %c0_i32_8 = arith.constant 0 : i32
    %9 = arith.cmpi eq, %arg2, %c0_i32_8 : i32
    %10 = arith.extui %9 : i1 to i32
    %c0_i32_9 = arith.constant 0 : i32
    %11 = arith.cmpi ne, %10, %c0_i32_9 : i32
    scf.if %11 {
      %c0_10 = arith.constant 0 : index
      %c0_11 = arith.constant 0 : index
      %12 = vector.load %arg9[%c0_10, %c0_11] : memref<256x128xf32, #tpu.memory_space<vmem>>, vector<256x128xf32>
      %c0_12 = arith.constant 0 : index
      %c0_13 = arith.constant 0 : index
      %13 = vector.load %arg5[%c0_12, %c0_13] : memref<1x128xf32, #tpu.memory_space<vmem>>, vector<1x128xf32>
      %14 = vector.broadcast %13 : vector<1x128xf32> to vector<256x128xf32>
      %15 = arith.mulf %12, %14 : vector<256x128xf32>
      %c0_14 = arith.constant 0 : index
      %c0_15 = arith.constant 0 : index
      %16 = vector.load %arg6[%c0_14, %c0_15] : memref<1x128xf32, #tpu.memory_space<vmem>>, vector<1x128xf32>
      %17 = vector.broadcast %16 : vector<1x128xf32> to vector<256x128xf32>
      %18 = arith.addf %15, %17 : vector<256x128xf32>
      %c0_16 = arith.constant 0 : index
      %c0_17 = arith.constant 0 : index
      %19 = vector.load %arg7[%c0_16, %c0_17] : memref<1x128xf32, #tpu.memory_space<vmem>>, vector<1x128xf32>
      %cst_18 = arith.constant 0.000000e+00 : f32
      %20 = vector.broadcast %cst_18 : f32 to vector<256x128xf32>
      %21 = arith.maximumf %18, %20 : vector<256x128xf32>
      %22 = vector.broadcast %19 : vector<1x128xf32> to vector<256x128xf32>
      %23 = arith.mulf %22, %21 : vector<256x128xf32>
      %c0_19 = arith.constant 0 : index
      %c0_20 = arith.constant 0 : index
      %24 = vector.load %arg8[%c0_19, %c0_20] : memref<256x128xf32, #tpu.memory_space<vmem>>, vector<256x128xf32>
      tpu.vector_store %arg8[%c0_19, %c0_20], %23 {strides = array<i32>} : memref<256x128xf32, #tpu.memory_space<vmem>>, vector<256x128xf32>,
    } else {
    }
    return
  }
  func.func @transform_0(%arg0: i32, %arg1: i32, %arg2: i32) -> (i32, i32) {
    %c0_i32 = arith.constant 0 : i32
    return %arg0, %arg2 : i32, i32
  }
  func.func @transform_1(%arg0: i32, %arg1: i32, %arg2: i32) -> (i32, i32) {
    %c0_i32 = arith.constant 0 : i32
    return %arg2, %arg1 : i32, i32
  }
  func.func @transform_2(%arg0: i32, %arg1: i32, %arg2: i32) -> (i32, i32) {
    %c0_i32 = arith.constant 0 : i32
    %c0_i32_0 = arith.constant 0 : i32
    return %c0_i32, %arg1 : i32, i32
  }
  func.func @transform_3(%arg0: i32, %arg1: i32, %arg2: i32) -> (i32, i32) {
    %c0_i32 = arith.constant 0 : i32
    %c0_i32_0 = arith.constant 0 : i32
    return %c0_i32, %arg1 : i32, i32
  }
  func.func @transform_4(%arg0: i32, %arg1: i32, %arg2: i32) -> (i32, i32) {
    %c0_i32 = arith.constant 0 : i32
    %c0_i32_0 = arith.constant 0 : i32
    return %c0_i32, %arg1 : i32, i32
  }
  func.func @transform_5(%arg0: i32, %arg1: i32, %arg2: i32) -> (i32, i32) {
    %c0_i32 = arith.constant 0 : i32
    return %arg0, %arg1 : i32, i32
  }
}

</mosaic_0001>

<llo_original>
// kernel: tpu_custom_call.1
$region0: #{tpu_custom_call.1}
  #allocation0 [shape = 'u32[]', space=smem, size = 0x4, offset = 0x4, fixed_abs, tag = 'smem constant byte address 0x4 - core index']
  #allocation1 [shape = 'u32[144,128]{1,0:T(1,128)}', space=vmem, size = 0x12000, scoped, tag = 'internal scratch']
  #allocation2 [shape = 'f32[256,128]{1,0:T(8,128)}', space=vmem, size = 0x20000, scoped, tag = 'scratch operand']
  %s0 = inlined_call_operand.hbm [shape: f32[512,128], index: 0, kind: input, shape index: {}]
  %s1 = inlined_call_operand.hbm [shape: f32[128,128], index: 1, kind: input, shape index: {}]
  %s2 = inlined_call_operand.vmem [shape: f32[1,128], index: 2, kind: input, shape index: {}]
  %s3 = inlined_call_operand.vmem [shape: f32[1,128], index: 3, kind: input, shape index: {}]
  %s4 = inlined_call_operand.vmem [shape: f32[1,128], index: 4, kind: input, shape index: {}]
  %s5 = inlined_call_operand.hbm [shape: f32[512,128], index: 5, kind: output, shape index: {}]
  %s6 = sld [smem:[#allocation0]]
  $region69: #{tpu_custom_call.1} parent=0
    _
  %s8 = ssub.s32 1, %s6
  %s9 = scalar_select 0, %s8, %s6
  $region1: #{tpu_custom_call.1} parent=0
    #allocation3 [shape = 'u8[262144]{0}', space=vmem, size = 0x40000, scoped, tag = 'input window, operand 0']
    #allocation4 [shape = 's32[2]{0}', space=sflag, size = 0x8, scoped, tag = 'scoped memory for tpu_custom_call.1']
    #allocation5 [shape = 's32[2]{0}', space=sflag, size = 0x8, scoped, tag = 'scoped memory for tpu_custom_call.1']
    #allocation6 [shape = 'u8[65536]{0}', space=vmem, size = 0x10000, scoped, tag = 'input window, operand 1, single buffered']
    #allocation7 [shape = 's32[1]{0}', space=sflag, size = 0x4, scoped, tag = 'scoped memory for tpu_custom_call.1']
    #allocation8 [shape = 'u8[262144]{0}', space=vmem, size = 0x40000, scoped, tag = 'output window, operand 0']
    %10 = vsyncpa [#allocation4], 0
    %s11 = scalar_lea.sflag [#allocation4], 1
    %12 = vsyncpa %s11, 0
    %13 = vsyncpa [#allocation7], 0
    %14 = vsyncpa [#allocation5], 0
    %s15 = scalar_lea.sflag [#allocation5], 1
    %16 = vsyncpa %s15, 0
    loop: start=0, step=1, limit=4
    $region2: #{tpu_custom_call.1} parent=1 // loop_pre_header
      _
    $region3: #{tpu_custom_call.1} parent=1 // loop_header
      %s18 = sphi 0, %s22
      %p19 = scmp.ge.s32.totalorder %s18, 4
      %s25 = sphi 0, %s44
      %s26 = sphi 0, %s40
      %s27 = sphi 0, %s36
      %s28 = sphi 0, %s25
      %s29 = sphi 0, %s26
      %s30 = sphi 0, %s27
      %s31 = sphi 0, %s28
      %s32 = sphi 0, %s29
      %s33 = sphi 0, %s30
      %s49 = sphi 0, %s51
      %s52 = sphi 0, %s49
      %s53 = sphi 0, %s52
      %s69 = sphi 0, %s53
      %s77 = sphi 0, %s79
      %s80 = sphi 0, %s77
      %s81 = sphi 0, %s80
      %s97 = sphi 0, %s81
      %s103 = sphi 0, %s105
      %s106 = sphi 0, %s103
      %s107 = sphi 0, %s106
      %s123 = sphi 0, %s107
      %s129 = sphi 0, %s131
      %s132 = sphi 0, %s129
      %s133 = sphi 0, %s132
      %s149 = sphi 0, %s133
      %s155 = sphi 0, %s157
      %s158 = sphi 0, %s155
      %s159 = sphi 0, %s158
      %s175 = sphi 0, %s159
      %s183 = sphi 0, %s185
      %s186 = sphi 0, %s183
      %s187 = sphi 0, %s186
      %s203 = sphi 0, %s187
    $region4: #{tpu_custom_call.1} parent=1 // loop_header_branch
      %21 = sbr.rel (%p19) target = $region8
    $region5: #{tpu_custom_call.1} parent=1 // loop_body
      %s23 = ssub.s32 %s18, 1
      %s24 = ssub.s32 %s18, 2
      %s34 = sadd.s32 1, %s27
      %p35 = scmp.ge.s32.totalorder %s34, 1
      %s36 = scalar_select %p35, 0, %s34
      %s37 = sadd.s32 1, %s26
      %s38 = scalar_select %p35, %s37, %s26
      %p39 = scmp.ge.s32.totalorder %s38, 1
      %s40 = scalar_select %p39, 0, %s38
      %s41 = sadd.s32 1, %s25
      %s42 = scalar_select %p39, %s41, %s25
      %p43 = scmp.ge.s32.totalorder %s42, 2
      %s44 = scalar_select %p43, 0, %s42
      %s45 = ssub.s32 %s25, %s44
      %s46 = ssub.s32 %s27, %s36
      %s47 = sor.u32 %s45, %s46
      %p48 = scmp.eq.s32.totalorder %s47, 0
      %s50 = sadd.s32 %s49, 1
      %s51 = scalar_select %p48, %s49, %s50
      %p54 = pneg %p48
      %p55 = scmp.eq.s32.totalorder %s18, 1
      %p56 = por %p54, %p55
      %p57 = scmp.ne.s32.totalorder %s49, %s52
      %p58 = scmp.eq.s32.totalorder %s18, 0
      %p59 = por %p57, %p58
      %p60 = scmp.ne.s32.totalorder %s49, %s52
      %p61 = scmp.eq.s32.totalorder %s23, 1
      %p62 = por %p60, %p61
      %p63 = scmp.ne.s32.totalorder %s52, %s53
      %p64 = scmp.eq.s32.totalorder %s23, 0
      %p65 = por %p63, %p64
      %p66 = scmp.ne.s32.totalorder %s52, %s53
      %p67 = scmp.eq.s32.totalorder %s24, 1
      %p68 = por %p66, %p67
      %p70 = scmp.ne.s32.totalorder %s53, %s69
      %p71 = scmp.eq.s32.totalorder %s24, 0
      %p72 = por %p70, %p71
      %s73 = ssub.s32 %s27, %s36
      %s74 = ssub.s32 %s26, %s40
      %s75 = sor.u32 %s73, %s74
      %p76 = scmp.eq.s32.totalorder %s75, 0
      %s78 = sadd.s32 %s77, 1
      %s79 = scalar_select %p76, %s77, %s78
      %p82 = pneg %p76
      %p83 = scmp.eq.s32.totalorder %s18, 1
      %p84 = por %p82, %p83
      %p85 = scmp.ne.s32.totalorder %s77, %s80
      %p86 = scmp.eq.s32.totalorder %s18, 0
      %p87 = por %p85, %p86
      %p88 = scmp.ne.s32.totalorder %s77, %s80
      %p89 = scmp.eq.s32.totalorder %s23, 1
      %p90 = por %p88, %p89
      %p91 = scmp.ne.s32.totalorder %s80, %s81
      %p92 = scmp.eq.s32.totalorder %s23, 0
      %p93 = por %p91, %p92
      %p94 = scmp.ne.s32.totalorder %s80, %s81
      %p95 = scmp.eq.s32.totalorder %s24, 1
      %p96 = por %p94, %p95
      %p98 = scmp.ne.s32.totalorder %s81, %s97
      %p99 = scmp.eq.s32.totalorder %s24, 0
      %p100 = por %p98, %p99
      %s101 = ssub.s32 %s26, %s40
      %p102 = scmp.eq.s32.totalorder %s101, 0
      %s104 = sadd.s32 %s103, 1
      %s105 = scalar_select %p102, %s103, %s104
      %p108 = pneg %p102
      %p109 = scmp.eq.s32.totalorder %s18, 1
      %p110 = por %p108, %p109
      %p111 = scmp.ne.s32.totalorder %s103, %s106
      %p112 = scmp.eq.s32.totalorder %s18, 0
      %p113 = por %p111, %p112
      %p114 = scmp.ne.s32.totalorder %s103, %s106
      %p115 = scmp.eq.s32.totalorder %s23, 1
      %p116 = por %p114, %p115
      %p117 = scmp.ne.s32.totalorder %s106, %s107
      %p118 = scmp.eq.s32.totalorder %s23, 0
      %p119 = por %p117, %p118
      %p120 = scmp.ne.s32.totalorder %s106, %s107
      %p121 = scmp.eq.s32.totalorder %s24, 1
      %p122 = por %p120, %p121
      %p124 = scmp.ne.s32.totalorder %s107, %s123
      %p125 = scmp.eq.s32.totalorder %s24, 0
      %p126 = por %p124, %p125
      %s127 = ssub.s32 %s26, %s40
      %p128 = scmp.eq.s32.totalorder %s127, 0
      %s130 = sadd.s32 %s129, 1
      %s131 = scalar_select %p128, %s129, %s130
      %p134 = pneg %p128
      %p135 = scmp.eq.s32.totalorder %s18, 1
      %p136 = por %p134, %p135
      %p137 = scmp.ne.s32.totalorder %s129, %s132
      %p138 = scmp.eq.s32.totalorder %s18, 0
      %p139 = por %p137, %p138
      %p140 = scmp.ne.s32.totalorder %s129, %s132
      %p141 = scmp.eq.s32.totalorder %s23, 1
      %p142 = por %p140, %p141
      %p143 = scmp.ne.s32.totalorder %s132, %s133
      %p144 = scmp.eq.s32.totalorder %s23, 0
      %p145 = por %p143, %p144
      %p146 = scmp.ne.s32.totalorder %s132, %s133
      %p147 = scmp.eq.s32.totalorder %s24, 1
      %p148 = por %p146, %p147
      %p150 = scmp.ne.s32.totalorder %s133, %s149
      %p151 = scmp.eq.s32.totalorder %s24, 0
      %p152 = por %p150, %p151
      %s153 = ssub.s32 %s26, %s40
      %p154 = scmp.eq.s32.totalorder %s153, 0
      %s156 = sadd.s32 %s155, 1
      %s157 = scalar_select %p154, %s155, %s156
      %p160 = pneg %p154
      %p161 = scmp.eq.s32.totalorder %s18, 1
      %p162 = por %p160, %p161
      %p163 = scmp.ne.s32.totalorder %s155, %s158
      %p164 = scmp.eq.s32.totalorder %s18, 0
      %p165 = por %p163, %p164
      %p166 = scmp.ne.s32.totalorder %s155, %s158
      %p167 = scmp.eq.s32.totalorder %s23, 1
      %p168 = por %p166, %p167
      %p169 = scmp.ne.s32.totalorder %s158, %s159
      %p170 = scmp.eq.s32.totalorder %s23, 0
      %p171 = por %p169, %p170
      %p172 = scmp.ne.s32.totalorder %s158, %s159
      %p173 = scmp.eq.s32.totalorder %s24, 1
      %p174 = por %p172, %p173
      %p176 = scmp.ne.s32.totalorder %s159, %s175
      %p177 = scmp.eq.s32.totalorder %s24, 0
      %p178 = por %p176, %p177
      %s179 = ssub.s32 %s25, %s44
      %s180 = ssub.s32 %s26, %s40
      %s181 = sor.u32 %s179, %s180
      %p182 = scmp.eq.s32.totalorder %s181, 0
      %s184 = sadd.s32 %s183, 1
      %s185 = scalar_select %p182, %s183, %s184
      %p188 = pneg %p182
      %p189 = scmp.eq.s32.totalorder %s18, 1
      %p190 = por %p188, %p189
      %p191 = scmp.ne.s32.totalorder %s183, %s186
      %p192 = scmp.eq.s32.totalorder %s18, 0
      %p193 = por %p191, %p192
      %p194 = scmp.ne.s32.totalorder %s183, %s186
      %p195 = scmp.eq.s32.totalorder %s23, 1
      %p196 = por %p194, %p195
      %p197 = scmp.ne.s32.totalorder %s186, %s187
      %p198 = scmp.eq.s32.totalorder %s23, 0
      %p199 = por %p197, %p198
      %p200 = scmp.ne.s32.totalorder %s186, %s187
      %p201 = scmp.eq.s32.totalorder %s24, 1
      %p202 = por %p200, %p201
      %p204 = scmp.ne.s32.totalorder %s187, %s203
      %p205 = scmp.eq.s32.totalorder %s24, 0
      %p206 = por %p204, %p205
      %p207 = scmp.le.s32.totalorder 1, %s18
      %p208 = scmp.lt.s32.totalorder %s18, 3
      %p209 = pnand %p207, %p208
      %p210 = pneg %p209
      // Predicated region
      $region9: #{tpu_custom_call.1} parent=5 // pred_check
        _
      $region10: #{tpu_custom_call.1} parent=5 // pred_check_branch
        %212 = sbr.rel (%p209) target = $region12
      $region11: #{tpu_custom_call.1} parent=5 // pred_region
        %s213 = ssub.s32 %s18, 1
        // Predicated region
        $region13: #{tpu_custom_call.1} parent=11 // pred_check
          %p214 = pneg %p93
        $region14: #{tpu_custom_call.1} parent=11 // pred_check_branch
          %216 = sbr.rel (%p214) target = $region16
        $region15: #{tpu_custom_call.1} parent=11 // pred_region
          %s217 = smul.u32 16, %s30
          %s219 = ssub.s32 2048, 2048
          %220 = vsyncadd [#allocation7], %s219
          %s221 = sadd.s32 %s29, %s217
          %s222 = smul.addr %s221, 128
          %s223 = scalar_lea.hbm %s1, %s222
          %s224 = sshll.u32 [#allocation6], 4
          %s225 = int_to_ptr.vmem [resolvable:$true] %s224
          %230 = dma.hbm_to_vmem [thread:$0]  %s223, 2048, %s225, [#allocation7], 128, 128, 8
        $region16: #{tpu_custom_call.1} parent=11 // pred_fallthru
          _
        // Predicated region
        $region17: #{tpu_custom_call.1} parent=11 // pred_check
          %p231 = pneg %p119
        $region18: #{tpu_custom_call.1} parent=11 // pred_check_branch
          %233 = sbr.rel (%p231) target = $region20
        $region19: #{tpu_custom_call.1} parent=11 // pred_region
          %p234 = scmp.lt.s32.totalorder %s29, 0
          %s235 = scalar_select %p234, %s29, 0
          %s236 = scalar_lea.vmem %s2, %s235
        $region20: #{tpu_custom_call.1} parent=11 // pred_fallthru
          _
        // Predicated region
        $region21: #{tpu_custom_call.1} parent=11 // pred_check
          %p237 = pneg %p145
        $region22: #{tpu_custom_call.1} parent=11 // pred_check_branch
          %239 = sbr.rel (%p237) target = $region24
        $region23: #{tpu_custom_call.1} parent=11 // pred_region
          %p240 = scmp.lt.s32.totalorder %s29, 0
          %s241 = scalar_select %p240, %s29, 0
          %s242 = scalar_lea.vmem %s3, %s241
        $region24: #{tpu_custom_call.1} parent=11 // pred_fallthru
          _
        // Predicated region
        $region25: #{tpu_custom_call.1} parent=11 // pred_check
          %p243 = pneg %p171
        $region26: #{tpu_custom_call.1} parent=11 // pred_check_branch
          %245 = sbr.rel (%p243) target = $region28
        $region27: #{tpu_custom_call.1} parent=11 // pred_region
          %p246 = scmp.lt.s32.totalorder %s29, 0
          %s247 = scalar_select %p246, %s29, 0
          %s248 = scalar_lea.vmem %s4, %s247
        $region28: #{tpu_custom_call.1} parent=11 // pred_fallthru
          _
      $region12: #{tpu_custom_call.1} parent=5 // pred_fallthru
        _
      %p249 = scmp.lt.s32.totalorder %s18, 2
      // Predicated region
      $region29: #{tpu_custom_call.1} parent=5 // pred_check
        %p250 = pneg %p249
      $region30: #{tpu_custom_call.1} parent=5 // pred_check_branch
        %252 = sbr.rel (%p250) target = $region32
      $region31: #{tpu_custom_call.1} parent=5 // pred_region
        // Predicated region
        $region33: #{tpu_custom_call.1} parent=31 // pred_check
          %p253 = pneg %p59
        $region34: #{tpu_custom_call.1} parent=31 // pred_check_branch
          %255 = sbr.rel (%p253) target = $region36
        $region35: #{tpu_custom_call.1} parent=31 // pred_region
          %s256 = sand.u32 %s49, 1
          %s257 = scalar_lea.sflag [#allocation4], %s256
          %s258 = sand.u32 %s49, 1
          %s259 = smul.addr %s258, 256
          %s260 = scalar_lea.vmem [#allocation3], %s259
          %s261 = smul.u32 32, %s25
          %s263 = ssub.s32 4096, 4096
          %264 = vsyncadd %s257, %s263
          %s265 = sadd.s32 %s27, %s261
          %s266 = smul.addr %s265, 128
          %s267 = scalar_lea.hbm %s0, %s266
          %s268 = sshll.u32 %s260, 4
          %s269 = int_to_ptr.vmem [resolvable:$true] %s268
          %274 = dma.hbm_to_vmem [thread:$0]  %s267, 4096, %s269, %s257, 128, 128, 8
        $region36: #{tpu_custom_call.1} parent=31 // pred_fallthru
          _
      $region32: #{tpu_custom_call.1} parent=5 // pred_fallthru
        _
      %p275 = scmp.le.s32.totalorder 1, %s18
      %p276 = scmp.lt.s32.totalorder %s18, 3
      %p277 = pnand %p275, %p276
      %p278 = pneg %p277
      // Predicated region
      $region37: #{tpu_custom_call.1} parent=5 // pred_check
        _
      $region38: #{tpu_custom_call.1} parent=5 // pred_check_branch
        %280 = sbr.rel (%p277) target = $region40
      $region39: #{tpu_custom_call.1} parent=5 // pred_region
        %s281 = ssub.s32 %s18, 1
        %s282 = sand.u32 %s52, 1
        %s283 = scalar_lea.sflag [#allocation4], %s282
        %s284 = sand.u32 %s52, 1
        %s285 = smul.addr %s284, 256
        %s286 = scalar_lea.vmem [#allocation3], %s285
        // Predicated region
        $region41: #{tpu_custom_call.1} parent=39 // pred_check
          %p287 = pneg %p65
        $region42: #{tpu_custom_call.1} parent=39 // pred_check_branch
          %289 = sbr.rel (%p287) target = $region44
        $region43: #{tpu_custom_call.1} parent=39 // pred_region
          %290 = dma.done %s283, 4096
        $region44: #{tpu_custom_call.1} parent=39 // pred_fallthru
          _
        // Predicated region
        $region45: #{tpu_custom_call.1} parent=39 // pred_check
          %p291 = pneg %p93
        $region46: #{tpu_custom_call.1} parent=39 // pred_check_branch
          %293 = sbr.rel (%p291) target = $region48
        $region47: #{tpu_custom_call.1} parent=39 // pred_region
          %294 = dma.done [#allocation7], 2048
        $region48: #{tpu_custom_call.1} parent=39 // pred_fallthru
          _
        %s295 = sand.u32 %s52, 1
        %s296 = scalar_lea.sflag [#allocation4], %s295
        %s297 = sand.u32 %s52, 1
        %s298 = smul.addr %s297, 256
        %s299 = scalar_lea.vmem [#allocation3], %s298
        %p300 = pneg %p65
        %p301 = pneg %p62
        %p302 = pneg %p93
        %p303 = pneg %p90
        %p304 = scmp.lt.s32.totalorder %s29, 0
        %s305 = scalar_select %p304, %s29, 0
        %s306 = scalar_lea.vmem %s2, %s305
        %p307 = pneg %p119
        %p308 = pneg %p116
        %p309 = scmp.lt.s32.totalorder %s29, 0
        %s310 = scalar_select %p309, %s29, 0
        %s311 = scalar_lea.vmem %s3, %s310
        %p312 = pneg %p145
        %p313 = pneg %p142
        %p314 = scmp.lt.s32.totalorder %s29, 0
        %s315 = scalar_select %p314, %s29, 0
        %s316 = scalar_lea.vmem %s4, %s315
        %p317 = pneg %p171
        %p318 = pneg %p168
        %p319 = pneg %p199
        %p320 = pneg %p196
        %s321 = sand.u32 %s186, 1
        %s322 = scalar_lea.sflag [#allocation5], %s321
        %s323 = sand.u32 %s186, 1
        %s324 = smul.addr %s323, 256
        %s325 = scalar_lea.vmem [#allocation8], %s324
        %s326 = smul.u32 32, %s28
        %s327 = smul.u32 16, %s30
        %p328 = scmp.lt.s32.totalorder %s29, 0
        %s329 = scalar_select %p328, %s29, 0
        %s330 = scalar_lea.vmem %s2, %s329
        %p331 = scmp.lt.s32.totalorder %s29, 0
        %s332 = scalar_select %p331, %s29, 0
        %s333 = scalar_lea.vmem %s3, %s332
        %p334 = scmp.lt.s32.totalorder %s29, 0
        %s335 = scalar_select %p334, %s29, 0
        %s336 = scalar_lea.vmem %s4, %s335
        %s337 = smul.u32 32, %s28
        %p338 = scmp.eq.s32.totalorder %s30, 0
        // Predicated region
        $region49: #{tpu_custom_call.1} parent=39 // pred_check
          %p339 = pneg %p338
        $region50: #{tpu_custom_call.1} parent=39 // pred_check_branch
          %341 = sbr.rel (%p339) target = $region52
        $region51: #{tpu_custom_call.1} parent=39 // pred_region
          %342 = vst [vmem:[#allocation2] sm:$0xff] 0.0
          %343 = vst [vmem:[#allocation2 + $0x8] sm:$0xff] 0.0
          %344 = vst [vmem:[#allocation2 + $0x10] sm:$0xff] 0.0
          %345 = vst [vmem:[#allocation2 + $0x18] sm:$0xff] 0.0
          %346 = vst [vmem:[#allocation2 + $0x20] sm:$0xff] 0.0
          %347 = vst [vmem:[#allocation2 + $0x28] sm:$0xff] 0.0
          %348 = vst [vmem:[#allocation2 + $0x30] sm:$0xff] 0.0
          %349 = vst [vmem:[#allocation2 + $0x38] sm:$0xff] 0.0
          %350 = vst [vmem:[#allocation2 + $0x40] sm:$0xff] 0.0
          %351 = vst [vmem:[#allocation2 + $0x48] sm:$0xff] 0.0
          %352 = vst [vmem:[#allocation2 + $0x50] sm:$0xff] 0.0
          %353 = vst [vmem:[#allocation2 + $0x58] sm:$0xff] 0.0
          %354 = vst [vmem:[#allocation2 + $0x60] sm:$0xff] 0.0
          %355 = vst [vmem:[#allocation2 + $0x68] sm:$0xff] 0.0
          %356 = vst [vmem:[#allocation2 + $0x70] sm:$0xff] 0.0
          %357 = vst [vmem:[#allocation2 + $0x78] sm:$0xff] 0.0
          %358 = vst [vmem:[#allocation2 + $0x80] sm:$0xff] 0.0
          %359 = vst [vmem:[#allocation2 + $0x88] sm:$0xff] 0.0
          %360 = vst [vmem:[#allocation2 + $0x90] sm:$0xff] 0.0
          %361 = vst [vmem:[#allocation2 + $0x98] sm:$0xff] 0.0
          %362 = vst [vmem:[#allocation2 + $0xa0] sm:$0xff] 0.0
          %363 = vst [vmem:[#allocation2 + $0xa8] sm:$0xff] 0.0
          %364 = vst [vmem:[#allocation2 + $0xb0] sm:$0xff] 0.0
          %365 = vst [vmem:[#allocation2 + $0xb8] sm:$0xff] 0.0
          %366 = vst [vmem:[#allocation2 + $0xc0] sm:$0xff] 0.0
          %367 = vst [vmem:[#allocation2 + $0xc8] sm:$0xff] 0.0
          %368 = vst [vmem:[#allocation2 + $0xd0] sm:$0xff] 0.0
          %369 = vst [vmem:[#allocation2 + $0xd8] sm:$0xff] 0.0
          %370 = vst [vmem:[#allocation2 + $0xe0] sm:$0xff] 0.0
          %371 = vst [vmem:[#allocation2 + $0xe8] sm:$0xff] 0.0
          %372 = vst [vmem:[#allocation2 + $0xf0] sm:$0xff] 0.0
          %373 = vst [vmem:[#allocation2 + $0xf8] sm:$0xff] 0.0
        $region52: #{tpu_custom_call.1} parent=39 // pred_fallthru
          _
        %v374 = vld [vmem:[#allocation2] sm:$0xff]
        %v375 = vld [vmem:[#allocation2 + $0x8] sm:$0xff]
        %v376 = vld [vmem:[#allocation2 + $0x10] sm:$0xff]
        %v377 = vld [vmem:[#allocation2 + $0x18] sm:$0xff]
        %v378 = vld [vmem:[#allocation2 + $0x20] sm:$0xff]
        %v379 = vld [vmem:[#allocation2 + $0x28] sm:$0xff]
        %v380 = vld [vmem:[#allocation2 + $0x30] sm:$0xff]
        %v381 = vld [vmem:[#allocation2 + $0x38] sm:$0xff]
        %v382 = vld [vmem:[#allocation2 + $0x40] sm:$0xff]
        %v383 = vld [vmem:[#allocation2 + $0x48] sm:$0xff]
        %v384 = vld [vmem:[#allocation2 + $0x50] sm:$0xff]
        %v385 = vld [vmem:[#allocation2 + $0x58] sm:$0xff]
        %v386 = vld [vmem:[#allocation2 + $0x60] sm:$0xff]
        %v387 = vld [vmem:[#allocation2 + $0x68] sm:$0xff]
        %v388 = vld [vmem:[#allocation2 + $0x70] sm:$0xff]
        %v389 = vld [vmem:[#allocation2 + $0x78] sm:$0xff]
        %v390 = vld [vmem:[#allocation2 + $0x80] sm:$0xff]
        %v391 = vld [vmem:[#allocation2 + $0x88] sm:$0xff]
        %v392 = vld [vmem:[#allocation2 + $0x90] sm:$0xff]
        %v393 = vld [vmem:[#allocation2 + $0x98] sm:$0xff]
        %v394 = vld [vmem:[#allocation2 + $0xa0] sm:$0xff]
        %v395 = vld [vmem:[#allocation2 + $0xa8] sm:$0xff]
        %v396 = vld [vmem:[#allocation2 + $0xb0] sm:$0xff]
        %v397 = vld [vmem:[#allocation2 + $0xb8] sm:$0xff]
        %v398 = vld [vmem:[#allocation2 + $0xc0] sm:$0xff]
        %v399 = vld [vmem:[#allocation2 + $0xc8] sm:$0xff]
        %v400 = vld [vmem:[#allocation2 + $0xd0] sm:$0xff]
        %v401 = vld [vmem:[#allocation2 + $0xd8] sm:$0xff]
        %v402 = vld [vmem:[#allocation2 + $0xe0] sm:$0xff]
        %v403 = vld [vmem:[#allocation2 + $0xe8] sm:$0xff]
        %v404 = vld [vmem:[#allocation2 + $0xf0] sm:$0xff]
        %v405 = vld [vmem:[#allocation2 + $0xf8] sm:$0xff]
        %v406 = vld [vmem:[%s286] sm:$0xff]
        %v407 = vld [vmem:[%s286 + $0x8] sm:$0xff]
        %v408 = vld [vmem:[%s286 + $0x10] sm:$0xff]
        %v409 = vld [vmem:[%s286 + $0x18] sm:$0xff]
        %v410 = vld [vmem:[%s286 + $0x20] sm:$0xff]
        %v411 = vld [vmem:[%s286 + $0x28] sm:$0xff]
        %v412 = vld [vmem:[%s286 + $0x30] sm:$0xff]
        %v413 = vld [vmem:[%s286 + $0x38] sm:$0xff]
        %v414 = vld [vmem:[%s286 + $0x40] sm:$0xff]
        %v415 = vld [vmem:[%s286 + $0x48] sm:$0xff]
        %v416 = vld [vmem:[%s286 + $0x50] sm:$0xff]
        %v417 = vld [vmem:[%s286 + $0x58] sm:$0xff]
        %v418 = vld [vmem:[%s286 + $0x60] sm:$0xff]
        %v419 = vld [vmem:[%s286 + $0x68] sm:$0xff]
        %v420 = vld [vmem:[%s286 + $0x70] sm:$0xff]
        %v421 = vld [vmem:[%s286 + $0x78] sm:$0xff]
        %v422 = vld [vmem:[%s286 + $0x80] sm:$0xff]
        %v423 = vld [vmem:[%s286 + $0x88] sm:$0xff]
        %v424 = vld [vmem:[%s286 + $0x90] sm:$0xff]
        %v425 = vld [vmem:[%s286 + $0x98] sm:$0xff]
        %v426 = vld [vmem:[%s286 + $0xa0] sm:$0xff]
        %v427 = vld [vmem:[%s286 + $0xa8] sm:$0xff]
        %v428 = vld [vmem:[%s286 + $0xb0] sm:$0xff]
        %v429 = vld [vmem:[%s286 + $0xb8] sm:$0xff]
        %v430 = vld [vmem:[%s286 + $0xc0] sm:$0xff]
        %v431 = vld [vmem:[%s286 + $0xc8] sm:$0xff]
        %v432 = vld [vmem:[%s286 + $0xd0] sm:$0xff]
        %v433 = vld [vmem:[%s286 + $0xd8] sm:$0xff]
        %v434 = vld [vmem:[%s286 + $0xe0] sm:$0xff]
        %v435 = vld [vmem:[%s286 + $0xe8] sm:$0xff]
        %v436 = vld [vmem:[%s286 + $0xf0] sm:$0xff]
        %v437 = vld [vmem:[%s286 + $0xf8] sm:$0xff]
        %v438 = vld [vmem:[#allocation6] sm:$0xff]
        %v439 = vld [vmem:[#allocation6 + $0x8] sm:$0xff]
        %v440 = vld [vmem:[#allocation6 + $0x10] sm:$0xff]
        %v441 = vld [vmem:[#allocation6 + $0x18] sm:$0xff]
        %v442 = vld [vmem:[#allocation6 + $0x20] sm:$0xff]
        %v443 = vld [vmem:[#allocation6 + $0x28] sm:$0xff]
        %v444 = vld [vmem:[#allocation6 + $0x30] sm:$0xff]
        %v445 = vld [vmem:[#allocation6 + $0x38] sm:$0xff]
        %v446 = vld [vmem:[#allocation6 + $0x40] sm:$0xff]
        %v447 = vld [vmem:[#allocation6 + $0x48] sm:$0xff]
        %v448 = vld [vmem:[#allocation6 + $0x50] sm:$0xff]
        %v449 = vld [vmem:[#allocation6 + $0x58] sm:$0xff]
        %v450 = vld [vmem:[#allocation6 + $0x60] sm:$0xff]
        %v451 = vld [vmem:[#allocation6 + $0x68] sm:$0xff]
        %v452 = vld [vmem:[#allocation6 + $0x70] sm:$0xff]
        %v453 = vld [vmem:[#allocation6 + $0x78] sm:$0xff]
        %454 = vmatprep.subr.mxu0 0.0
        %455 = vmatpush1.msra.mxu0 %v453
        %456 = vmatprep.subr.mxu0 0.0
        %457 = vmatpush1.msra.mxu0 %v452
        %458 = vmatprep.subr.mxu0 0.0
        %459 = vmatpush1.msra.mxu0 %v451
        %460 = vmatprep.subr.mxu0 0.0
        %461 = vmatpush1.msra.mxu0 %v450
        %462 = vmatprep.subr.mxu0 0.0
        %463 = vmatpush1.msra.mxu0 %v449
        %464 = vmatprep.subr.mxu0 0.0
        %465 = vmatpush1.msra.mxu0 %v448
        %466 = vmatprep.subr.mxu0 0.0
        %467 = vmatpush1.msra.mxu0 %v447
        %468 = vmatprep.subr.mxu0 0.0
        %469 = vmatpush1.msra.mxu0 %v446
        %470 = vmatprep.subr.mxu0 0.0
        %471 = vmatpush1.msra.mxu0 %v445
        %472 = vmatprep.subr.mxu0 0.0
        %473 = vmatpush1.msra.mxu0 %v444
        %474 = vmatprep.subr.mxu0 0.0
        %475 = vmatpush1.msra.mxu0 %v443
        %476 = vmatprep.subr.mxu0 0.0
        %477 = vmatpush1.msra.mxu0 %v442
        %478 = vmatprep.subr.mxu0 0.0
        %479 = vmatpush1.msra.mxu0 %v441
        %480 = vmatprep.subr.mxu0 0.0
        %481 = vmatpush1.msra.mxu0 %v440
        %482 = vmatprep.subr.mxu0 0.0
        %483 = vmatpush1.msra.mxu0 %v439
        %484 = vmatprep.subr.mxu0 0.0
        %485 = vmatpush1.msra.mxu0 %v438
        %486 = vmatprep.subr.mxu0 0.0
        %487 = vmatpush2.msra.mxu0 0.0
        %488 = vmatprep.subr.mxu0 0.0
        %489 = vmatpush2.msra.mxu0 0.0
        %490 = vmatprep.subr.mxu0 0.0
        %491 = vmatpush2.msra.mxu0 0.0
        %492 = vmatprep.subr.mxu0 0.0
        %493 = vmatpush2.msra.mxu0 0.0
        %494 = vmatprep.subr.mxu0 0.0
        %495 = vmatpush2.msra.mxu0 0.0
        %496 = vmatprep.subr.mxu0 0.0
        %497 = vmatpush2.msra.mxu0 0.0
        %498 = vmatprep.subr.mxu0 0.0
        %499 = vmatpush2.msra.mxu0 0.0
        %500 = vmatprep.subr.mxu0 0.0
        %501 = vmatpush2.msra.mxu0 0.0
        %502 = vmatprep.subr.mxu0 0.0
        %503 = vmatpush2.msra.mxu0 0.0
        %504 = vmatprep.subr.mxu0 0.0
        %505 = vmatpush2.msra.mxu0 0.0
        %506 = vmatprep.subr.mxu0 0.0
        %507 = vmatpush2.msra.mxu0 0.0
        %508 = vmatprep.subr.mxu0 0.0
        %509 = vmatpush2.msra.mxu0 0.0
        %510 = vmatprep.subr.mxu0 0.0
        %511 = vmatpush2.msra.mxu0 0.0
        %512 = vmatprep.subr.mxu0 0.0
        %513 = vmatpush2.msra.mxu0 0.0
        %514 = vmatprep.subr.mxu0 0.0
        %515 = vmatpush2.msra.mxu0 0.0
        %516 = vmatprep.subr.mxu0 0.0
        %517 = vmatpush2.msra.mxu0 0.0
        %518 = vmatprep.mubr.f32.mxu0 0.0
        %519 = vmatmul.mubr.f32.gmra.mxu0 %v406
        %v520 = vpop.f32.mrf.mxu0
        %v521 = vadd.f32 0.0, %v520
        %v522 = vpop.f32.mrf.mxu0
        %523 = vmatprep.mubr.f32.mxu0 0.0
        %524 = vmatmul.mubr.f32.gmra.mxu0 %v407
        %v525 = vpop.f32.mrf.mxu0
        %v526 = vadd.f32 0.0, %v525
        %v527 = vpop.f32.mrf.mxu0
        %528 = vmatprep.mubr.f32.mxu0 0.0
        %529 = vmatmul.mubr.f32.gmra.mxu0 %v408
        %v530 = vpop.f32.mrf.mxu0
        %v531 = vadd.f32 0.0, %v530
        %v532 = vpop.f32.mrf.mxu0
        %533 = vmatprep.mubr.f32.mxu0 0.0
        %534 = vmatmul.mubr.f32.gmra.mxu0 %v409
        %v535 = vpop.f32.mrf.mxu0
        %v536 = vadd.f32 0.0, %v535
        %v537 = vpop.f32.mrf.mxu0
        %538 = vmatprep.mubr.f32.mxu0 0.0
        %539 = vmatmul.mubr.f32.gmra.mxu0 %v410
        %v540 = vpop.f32.mrf.mxu0
        %v541 = vadd.f32 0.0, %v540
        %v542 = vpop.f32.mrf.mxu0
        %543 = vmatprep.mubr.f32.mxu0 0.0
        %544 = vmatmul.mubr.f32.gmra.mxu0 %v411
        %v545 = vpop.f32.mrf.mxu0
        %v546 = vadd.f32 0.0, %v545
        %v547 = vpop.f32.mrf.mxu0
        %548 = vmatprep.mubr.f32.mxu0 0.0
        %549 = vmatmul.mubr.f32.gmra.mxu0 %v412
        %v550 = vpop.f32.mrf.mxu0
        %v551 = vadd.f32 0.0, %v550
        %v552 = vpop.f32.mrf.mxu0
        %553 = vmatprep.mubr.f32.mxu0 0.0
        %554 = vmatmul.mubr.f32.gmra.mxu0 %v413
        %v555 = vpop.f32.mrf.mxu0
        %v556 = vadd.f32 0.0, %v555
        %v557 = vpop.f32.mrf.mxu0
        %558 = vmatprep.mubr.f32.mxu0 0.0
        %559 = vmatmul.mubr.f32.gmra.mxu0 %v414
        %v560 = vpop.f32.mrf.mxu0
        %v561 = vadd.f32 0.0, %v560
        %v562 = vpop.f32.mrf.mxu0
        %563 = vmatprep.mubr.f32.mxu0 0.0
        %564 = vmatmul.mubr.f32.gmra.mxu0 %v415
        %v565 = vpop.f32.mrf.mxu0
        %v566 = vadd.f32 0.0, %v565
        %v567 = vpop.f32.mrf.mxu0
        %568 = vmatprep.mubr.f32.mxu0 0.0
        %569 = vmatmul.mubr.f32.gmra.mxu0 %v416
        %v570 = vpop.f32.mrf.mxu0
        %v571 = vadd.f32 0.0, %v570
        %v572 = vpop.f32.mrf.mxu0
        %573 = vmatprep.mubr.f32.mxu0 0.0
        %574 = vmatmul.mubr.f32.gmra.mxu0 %v417
        %v575 = vpop.f32.mrf.mxu0
        %v576 = vadd.f32 0.0, %v575
        %v577 = vpop.f32.mrf.mxu0
        %578 = vmatprep.mubr.f32.mxu0 0.0
        %579 = vmatmul.mubr.f32.gmra.mxu0 %v418
        %v580 = vpop.f32.mrf.mxu0
        %v581 = vadd.f32 0.0, %v580
        %v582 = vpop.f32.mrf.mxu0
        %583 = vmatprep.mubr.f32.mxu0 0.0
        %584 = vmatmul.mubr.f32.gmra.mxu0 %v419
        %v585 = vpop.f32.mrf.mxu0
        %v586 = vadd.f32 0.0, %v585
        %v587 = vpop.f32.mrf.mxu0
        %588 = vmatprep.mubr.f32.mxu0 0.0
        %589 = vmatmul.mubr.f32.gmra.mxu0 %v420
        %v590 = vpop.f32.mrf.mxu0
        %v591 = vadd.f32 0.0, %v590
        %v592 = vpop.f32.mrf.mxu0
        %593 = vmatprep.mubr.f32.mxu0 0.0
        %594 = vmatmul.mubr.f32.gmra.mxu0 %v421
        %v595 = vpop.f32.mrf.mxu0
        %v596 = vadd.f32 0.0, %v595
        %v597 = vpop.f32.mrf.mxu0
        %598 = vmatprep.mubr.f32.mxu0 0.0
        %599 = vmatmul.mubr.f32.gmra.mxu0 %v422
        %v600 = vpop.f32.mrf.mxu0
        %v601 = vadd.f32 0.0, %v600
        %v602 = vpop.f32.mrf.mxu0
        %603 = vmatprep.mubr.f32.mxu0 0.0
        %604 = vmatmul.mubr.f32.gmra.mxu0 %v423
        %v605 = vpop.f32.mrf.mxu0
        %v606 = vadd.f32 0.0, %v605
        %v607 = vpop.f32.mrf.mxu0
        %608 = vmatprep.mubr.f32.mxu0 0.0
        %609 = vmatmul.mubr.f32.gmra.mxu0 %v424
        %v610 = vpop.f32.mrf.mxu0
        %v611 = vadd.f32 0.0, %v610
        %v612 = vpop.f32.mrf.mxu0
        %613 = vmatprep.mubr.f32.mxu0 0.0
        %614 = vmatmul.mubr.f32.gmra.mxu0 %v425
        %v615 = vpop.f32.mrf.mxu0
        %v616 = vadd.f32 0.0, %v615
        %v617 = vpop.f32.mrf.mxu0
        %618 = vmatprep.mubr.f32.mxu0 0.0
        %619 = vmatmul.mubr.f32.gmra.mxu0 %v426
        %v620 = vpop.f32.mrf.mxu0
        %v621 = vadd.f32 0.0, %v620
        %v622 = vpop.f32.mrf.mxu0
        %623 = vmatprep.mubr.f32.mxu0 0.0
        %624 = vmatmul.mubr.f32.gmra.mxu0 %v427
        %v625 = vpop.f32.mrf.mxu0
        %v626 = vadd.f32 0.0, %v625
        %v627 = vpop.f32.mrf.mxu0
        %628 = vmatprep.mubr.f32.mxu0 0.0
        %629 = vmatmul.mubr.f32.gmra.mxu0 %v428
        %v630 = vpop.f32.mrf.mxu0
        %v631 = vadd.f32 0.0, %v630
        %v632 = vpop.f32.mrf.mxu0
        %633 = vmatprep.mubr.f32.mxu0 0.0
        %634 = vmatmul.mubr.f32.gmra.mxu0 %v429
        %v635 = vpop.f32.mrf.mxu0
        %v636 = vadd.f32 0.0, %v635
        %v637 = vpop.f32.mrf.mxu0
        %638 = vmatprep.mubr.f32.mxu0 0.0
        %639 = vmatmul.mubr.f32.gmra.mxu0 %v430
        %v640 = vpop.f32.mrf.mxu0
        %v641 = vadd.f32 0.0, %v640
        %v642 = vpop.f32.mrf.mxu0
        %643 = vmatprep.mubr.f32.mxu0 0.0
        %644 = vmatmul.mubr.f32.gmra.mxu0 %v431
        %v645 = vpop.f32.mrf.mxu0
        %v646 = vadd.f32 0.0, %v645
        %v647 = vpop.f32.mrf.mxu0
        %648 = vmatprep.mubr.f32.mxu0 0.0
        %649 = vmatmul.mubr.f32.gmra.mxu0 %v432
        %v650 = vpop.f32.mrf.mxu0
        %v651 = vadd.f32 0.0, %v650
        %v652 = vpop.f32.mrf.mxu0
        %653 = vmatprep.mubr.f32.mxu0 0.0
        %654 = vmatmul.mubr.f32.gmra.mxu0 %v433
        %v655 = vpop.f32.mrf.mxu0
        %v656 = vadd.f32 0.0, %v655
        %v657 = vpop.f32.mrf.mxu0
        %658 = vmatprep.mubr.f32.mxu0 0.0
        %659 = vmatmul.mubr.f32.gmra.mxu0 %v434
        %v660 = vpop.f32.mrf.mxu0
        %v661 = vadd.f32 0.0, %v660
        %v662 = vpop.f32.mrf.mxu0
        %663 = vmatprep.mubr.f32.mxu0 0.0
        %664 = vmatmul.mubr.f32.gmra.mxu0 %v435
        %v665 = vpop.f32.mrf.mxu0
        %v666 = vadd.f32 0.0, %v665
        %v667 = vpop.f32.mrf.mxu0
        %668 = vmatprep.mubr.f32.mxu0 0.0
        %669 = vmatmul.mubr.f32.gmra.mxu0 %v436
        %v670 = vpop.f32.mrf.mxu0
        %v671 = vadd.f32 0.0, %v670
        %v672 = vpop.f32.mrf.mxu0
        %673 = vmatprep.mubr.f32.mxu0 0.0
        %674 = vmatmul.mubr.f32.gmra.mxu0 %v437
        %v675 = vpop.f32.mrf.mxu0
        %v676 = vadd.f32 0.0, %v675
        %v677 = vpop.f32.mrf.mxu0
        %678 = vdwg.mxu0
        %v679 = vadd.f32 %v374, %v521
        %v680 = vadd.f32 %v375, %v526
        %v681 = vadd.f32 %v376, %v531
        %v682 = vadd.f32 %v377, %v536
        %v683 = vadd.f32 %v378, %v541
        %v684 = vadd.f32 %v379, %v546
        %v685 = vadd.f32 %v380, %v551
        %v686 = vadd.f32 %v381, %v556
        %v687 = vadd.f32 %v382, %v561
        %v688 = vadd.f32 %v383, %v566
        %v689 = vadd.f32 %v384, %v571
        %v690 = vadd.f32 %v385, %v576
        %v691 = vadd.f32 %v386, %v581
        %v692 = vadd.f32 %v387, %v586
        %v693 = vadd.f32 %v388, %v591
        %v694 = vadd.f32 %v389, %v596
        %v695 = vadd.f32 %v390, %v601
        %v696 = vadd.f32 %v391, %v606
        %v697 = vadd.f32 %v392, %v611
        %v698 = vadd.f32 %v393, %v616
        %v699 = vadd.f32 %v394, %v621
        %v700 = vadd.f32 %v395, %v626
        %v701 = vadd.f32 %v396, %v631
        %v702 = vadd.f32 %v397, %v636
        %v703 = vadd.f32 %v398, %v641
        %v704 = vadd.f32 %v399, %v646
        %v705 = vadd.f32 %v400, %v651
        %v706 = vadd.f32 %v401, %v656
        %v707 = vadd.f32 %v402, %v661
        %v708 = vadd.f32 %v403, %v666
        %v709 = vadd.f32 %v404, %v671
        %v710 = vadd.f32 %v405, %v676
        %711 = vst [vmem:[#allocation2] sm:$0xff] %v679
        %712 = vst [vmem:[#allocation2 + $0x8] sm:$0xff] %v680
        %713 = vst [vmem:[#allocation2 + $0x10] sm:$0xff] %v681
        %714 = vst [vmem:[#allocation2 + $0x18] sm:$0xff] %v682
        %715 = vst [vmem:[#allocation2 + $0x20] sm:$0xff] %v683
        %716 = vst [vmem:[#allocation2 + $0x28] sm:$0xff] %v684
        %717 = vst [vmem:[#allocation2 + $0x30] sm:$0xff] %v685
        %718 = vst [vmem:[#allocation2 + $0x38] sm:$0xff] %v686
        %719 = vst [vmem:[#allocation2 + $0x40] sm:$0xff] %v687
        %720 = vst [vmem:[#allocation2 + $0x48] sm:$0xff] %v688
        %721 = vst [vmem:[#allocation2 + $0x50] sm:$0xff] %v689
        %722 = vst [vmem:[#allocation2 + $0x58] sm:$0xff] %v690
        %723 = vst [vmem:[#allocation2 + $0x60] sm:$0xff] %v691
        %724 = vst [vmem:[#allocation2 + $0x68] sm:$0xff] %v692
        %725 = vst [vmem:[#allocation2 + $0x70] sm:$0xff] %v693
        %726 = vst [vmem:[#allocation2 + $0x78] sm:$0xff] %v694
        %727 = vst [vmem:[#allocation2 + $0x80] sm:$0xff] %v695
        %728 = vst [vmem:[#allocation2 + $0x88] sm:$0xff] %v696
        %729 = vst [vmem:[#allocation2 + $0x90] sm:$0xff] %v697
        %730 = vst [vmem:[#allocation2 + $0x98] sm:$0xff] %v698
        %731 = vst [vmem:[#allocation2 + $0xa0] sm:$0xff] %v699
        %732 = vst [vmem:[#allocation2 + $0xa8] sm:$0xff] %v700
        %733 = vst [vmem:[#allocation2 + $0xb0] sm:$0xff] %v701
        %734 = vst [vmem:[#allocation2 + $0xb8] sm:$0xff] %v702
        %735 = vst [vmem:[#allocation2 + $0xc0] sm:$0xff] %v703
        %736 = vst [vmem:[#allocation2 + $0xc8] sm:$0xff] %v704
        %737 = vst [vmem:[#allocation2 + $0xd0] sm:$0xff] %v705
        %738 = vst [vmem:[#allocation2 + $0xd8] sm:$0xff] %v706
        %739 = vst [vmem:[#allocation2 + $0xe0] sm:$0xff] %v707
        %740 = vst [vmem:[#allocation2 + $0xe8] sm:$0xff] %v708
        %741 = vst [vmem:[#allocation2 + $0xf0] sm:$0xff] %v709
        %742 = vst [vmem:[#allocation2 + $0xf8] sm:$0xff] %v710
        // Predicated region
        $region53: #{tpu_custom_call.1} parent=39 // pred_check
          %p743 = pneg %p338
        $region54: #{tpu_custom_call.1} parent=39 // pred_check_branch
          %745 = sbr.rel (%p743) target = $region56
        $region55: #{tpu_custom_call.1} parent=39 // pred_region
          %v746 = vld [vmem:[#allocation2] sm:$0xff]
          %v747 = vld [vmem:[#allocation2 + $0x8] sm:$0xff]
          %v748 = vld [vmem:[#allocation2 + $0x10] sm:$0xff]
          %v749 = vld [vmem:[#allocation2 + $0x18] sm:$0xff]
          %v750 = vld [vmem:[#allocation2 + $0x20] sm:$0xff]
          %v751 = vld [vmem:[#allocation2 + $0x28] sm:$0xff]
          %v752 = vld [vmem:[#allocation2 + $0x30] sm:$0xff]
          %v753 = vld [vmem:[#allocation2 + $0x38] sm:$0xff]
          %v754 = vld [vmem:[#allocation2 + $0x40] sm:$0xff]
          %v755 = vld [vmem:[#allocation2 + $0x48] sm:$0xff]
          %v756 = vld [vmem:[#allocation2 + $0x50] sm:$0xff]
          %v757 = vld [vmem:[#allocation2 + $0x58] sm:$0xff]
          %v758 = vld [vmem:[#allocation2 + $0x60] sm:$0xff]
          %v759 = vld [vmem:[#allocation2 + $0x68] sm:$0xff]
          %v760 = vld [vmem:[#allocation2 + $0x70] sm:$0xff]
          %v761 = vld [vmem:[#allocation2 + $0x78] sm:$0xff]
          %v762 = vld [vmem:[#allocation2 + $0x80] sm:$0xff]
          %v763 = vld [vmem:[#allocation2 + $0x88] sm:$0xff]
          %v764 = vld [vmem:[#allocation2 + $0x90] sm:$0xff]
          %v765 = vld [vmem:[#allocation2 + $0x98] sm:$0xff]
          %v766 = vld [vmem:[#allocation2 + $0xa0] sm:$0xff]
          %v767 = vld [vmem:[#allocation2 + $0xa8] sm:$0xff]
          %v768 = vld [vmem:[#allocation2 + $0xb0] sm:$0xff]
          %v769 = vld [vmem:[#allocation2 + $0xb8] sm:$0xff]
          %v770 = vld [vmem:[#allocation2 + $0xc0] sm:$0xff]
          %v771 = vld [vmem:[#allocation2 + $0xc8] sm:$0xff]
          %v772 = vld [vmem:[#allocation2 + $0xd0] sm:$0xff]
          %v773 = vld [vmem:[#allocation2 + $0xd8] sm:$0xff]
          %v774 = vld [vmem:[#allocation2 + $0xe0] sm:$0xff]
          %v775 = vld [vmem:[#allocation2 + $0xe8] sm:$0xff]
          %v776 = vld [vmem:[#allocation2 + $0xf0] sm:$0xff]
          %v777 = vld [vmem:[#allocation2 + $0xf8] sm:$0xff]
          %v778 = vld [vmem:[%s330] sm:$0x1]
          %v780 = vlaneseq
          %v781 = vshrl.u32 %v780, 7
          %v782 = vsub.s32 0, %v781
          %v783 = vrot.slane %v778, %v782
          %v785 = vmul.f32 %v746, %v783
          %v786 = vmul.f32 %v747, %v783
          %v787 = vmul.f32 %v748, %v783
          %v788 = vmul.f32 %v749, %v783
          %v789 = vmul.f32 %v750, %v783
          %v790 = vmul.f32 %v751, %v783
          %v791 = vmul.f32 %v752, %v783
          %v792 = vmul.f32 %v753, %v783
          %v793 = vmul.f32 %v754, %v783
          %v794 = vmul.f32 %v755, %v783
          %v795 = vmul.f32 %v756, %v783
          %v796 = vmul.f32 %v757, %v783
          %v797 = vmul.f32 %v758, %v783
          %v798 = vmul.f32 %v759, %v783
          %v799 = vmul.f32 %v760, %v783
          %v800 = vmul.f32 %v761, %v783
          %v801 = vmul.f32 %v762, %v783
          %v802 = vmul.f32 %v763, %v783
          %v803 = vmul.f32 %v764, %v783
          %v804 = vmul.f32 %v765, %v783
          %v805 = vmul.f32 %v766, %v783
          %v806 = vmul.f32 %v767, %v783
          %v807 = vmul.f32 %v768, %v783
          %v808 = vmul.f32 %v769, %v783
          %v809 = vmul.f32 %v770, %v783
          %v810 = vmul.f32 %v771, %v783
          %v811 = vmul.f32 %v772, %v783
          %v812 = vmul.f32 %v773, %v783
          %v813 = vmul.f32 %v774, %v783
          %v814 = vmul.f32 %v775, %v783
          %v815 = vmul.f32 %v776, %v783
          %v816 = vmul.f32 %v777, %v783
          %v817 = vld [vmem:[%s333] sm:$0x1]
          %v819 = vlaneseq
          %v820 = vshrl.u32 %v819, 7
          %v821 = vsub.s32 0, %v820
          %v822 = vrot.slane %v817, %v821
          %v824 = vadd.f32 %v785, %v822
          %v825 = vadd.f32 %v786, %v822
          %v826 = vadd.f32 %v787, %v822
          %v827 = vadd.f32 %v788, %v822
          %v828 = vadd.f32 %v789, %v822
          %v829 = vadd.f32 %v790, %v822
          %v830 = vadd.f32 %v791, %v822
          %v831 = vadd.f32 %v792, %v822
          %v832 = vadd.f32 %v793, %v822
          %v833 = vadd.f32 %v794, %v822
          %v834 = vadd.f32 %v795, %v822
          %v835 = vadd.f32 %v796, %v822
          %v836 = vadd.f32 %v797, %v822
          %v837 = vadd.f32 %v798, %v822
          %v838 = vadd.f32 %v799, %v822
          %v839 = vadd.f32 %v800, %v822
          %v840 = vadd.f32 %v801, %v822
          %v841 = vadd.f32 %v802, %v822
          %v842 = vadd.f32 %v803, %v822
          %v843 = vadd.f32 %v804, %v822
          %v844 = vadd.f32 %v805, %v822
          %v845 = vadd.f32 %v806, %v822
          %v846 = vadd.f32 %v807, %v822
          %v847 = vadd.f32 %v808, %v822
          %v848 = vadd.f32 %v809, %v822
          %v849 = vadd.f32 %v810, %v822
          %v850 = vadd.f32 %v811, %v822
          %v851 = vadd.f32 %v812, %v822
          %v852 = vadd.f32 %v813, %v822
          %v853 = vadd.f32 %v814, %v822
          %v854 = vadd.f32 %v815, %v822
          %v855 = vadd.f32 %v816, %v822
          %v856 = vld [vmem:[%s336] sm:$0x1]
          %v857 = vmax.f32 %v824, 0.0
          %v858 = vmax.f32 %v825, 0.0
          %v859 = vmax.f32 %v826, 0.0
          %v860 = vmax.f32 %v827, 0.0
          %v861 = vmax.f32 %v828, 0.0
          %v862 = vmax.f32 %v829, 0.0
          %v863 = vmax.f32 %v830, 0.0
          %v864 = vmax.f32 %v831, 0.0
          %v865 = vmax.f32 %v832, 0.0
          %v866 = vmax.f32 %v833, 0.0
          %v867 = vmax.f32 %v834, 0.0
          %v868 = vmax.f32 %v835, 0.0
          %v869 = vmax.f32 %v836, 0.0
          %v870 = vmax.f32 %v837, 0.0
          %v871 = vmax.f32 %v838, 0.0
          %v872 = vmax.f32 %v839, 0.0
          %v873 = vmax.f32 %v840, 0.0
          %v874 = vmax.f32 %v841, 0.0
          %v875 = vmax.f32 %v842, 0.0
          %v876 = vmax.f32 %v843, 0.0
          %v877 = vmax.f32 %v844, 0.0
          %v878 = vmax.f32 %v845, 0.0
          %v879 = vmax.f32 %v846, 0.0
          %v880 = vmax.f32 %v847, 0.0
          %v881 = vmax.f32 %v848, 0.0
          %v882 = vmax.f32 %v849, 0.0
          %v883 = vmax.f32 %v850, 0.0
          %v884 = vmax.f32 %v851, 0.0
          %v885 = vmax.f32 %v852, 0.0
          %v886 = vmax.f32 %v853, 0.0
          %v887 = vmax.f32 %v854, 0.0
          %v888 = vmax.f32 %v855, 0.0
          %v890 = vlaneseq
          %v891 = vshrl.u32 %v890, 7
          %v892 = vsub.s32 0, %v891
          %v893 = vrot.slane %v856, %v892
          %v895 = vmul.f32 %v893, %v857
          %v896 = vmul.f32 %v893, %v858
          %v897 = vmul.f32 %v893, %v859
          %v898 = vmul.f32 %v893, %v860
          %v899 = vmul.f32 %v893, %v861
          %v900 = vmul.f32 %v893, %v862
          %v901 = vmul.f32 %v893, %v863
          %v902 = vmul.f32 %v893, %v864
          %v903 = vmul.f32 %v893, %v865
          %v904 = vmul.f32 %v893, %v866
          %v905 = vmul.f32 %v893, %v867
          %v906 = vmul.f32 %v893, %v868
          %v907 = vmul.f32 %v893, %v869
          %v908 = vmul.f32 %v893, %v870
          %v909 = vmul.f32 %v893, %v871
          %v910 = vmul.f32 %v893, %v872
          %v911 = vmul.f32 %v893, %v873
          %v912 = vmul.f32 %v893, %v874
          %v913 = vmul.f32 %v893, %v875
          %v914 = vmul.f32 %v893, %v876
          %v915 = vmul.f32 %v893, %v877
          %v916 = vmul.f32 %v893, %v878
          %v917 = vmul.f32 %v893, %v879
          %v918 = vmul.f32 %v893, %v880
          %v919 = vmul.f32 %v893, %v881
          %v920 = vmul.f32 %v893, %v882
          %v921 = vmul.f32 %v893, %v883
          %v922 = vmul.f32 %v893, %v884
          %v923 = vmul.f32 %v893, %v885
          %v924 = vmul.f32 %v893, %v886
          %v925 = vmul.f32 %v893, %v887
          %v926 = vmul.f32 %v893, %v888
          %927 = vst [vmem:[%s325] sm:$0xff] %v895
          %928 = vst [vmem:[%s325 + $0x8] sm:$0xff] %v896
          %929 = vst [vmem:[%s325 + $0x10] sm:$0xff] %v897
          %930 = vst [vmem:[%s325 + $0x18] sm:$0xff] %v898
          %931 = vst [vmem:[%s325 + $0x20] sm:$0xff] %v899
          %932 = vst [vmem:[%s325 + $0x28] sm:$0xff] %v900
          %933 = vst [vmem:[%s325 + $0x30] sm:$0xff] %v901
          %934 = vst [vmem:[%s325 + $0x38] sm:$0xff] %v902
          %935 = vst [vmem:[%s325 + $0x40] sm:$0xff] %v903
          %936 = vst [vmem:[%s325 + $0x48] sm:$0xff] %v904
          %937 = vst [vmem:[%s325 + $0x50] sm:$0xff] %v905
          %938 = vst [vmem:[%s325 + $0x58] sm:$0xff] %v906
          %939 = vst [vmem:[%s325 + $0x60] sm:$0xff] %v907
          %940 = vst [vmem:[%s325 + $0x68] sm:$0xff] %v908
          %941 = vst [vmem:[%s325 + $0x70] sm:$0xff] %v909
          %942 = vst [vmem:[%s325 + $0x78] sm:$0xff] %v910
          %943 = vst [vmem:[%s325 + $0x80] sm:$0xff] %v911
          %944 = vst [vmem:[%s325 + $0x88] sm:$0xff] %v912
          %945 = vst [vmem:[%s325 + $0x90] sm:$0xff] %v913
          %946 = vst [vmem:[%s325 + $0x98] sm:$0xff] %v914
          %947 = vst [vmem:[%s325 + $0xa0] sm:$0xff] %v915
          %948 = vst [vmem:[%s325 + $0xa8] sm:$0xff] %v916
          %949 = vst [vmem:[%s325 + $0xb0] sm:$0xff] %v917
          %950 = vst [vmem:[%s325 + $0xb8] sm:$0xff] %v918
          %951 = vst [vmem:[%s325 + $0xc0] sm:$0xff] %v919
          %952 = vst [vmem:[%s325 + $0xc8] sm:$0xff] %v920
          %953 = vst [vmem:[%s325 + $0xd0] sm:$0xff] %v921
          %954 = vst [vmem:[%s325 + $0xd8] sm:$0xff] %v922
          %955 = vst [vmem:[%s325 + $0xe0] sm:$0xff] %v923
          %956 = vst [vmem:[%s325 + $0xe8] sm:$0xff] %v924
          %957 = vst [vmem:[%s325 + $0xf0] sm:$0xff] %v925
          %958 = vst [vmem:[%s325 + $0xf8] sm:$0xff] %v926
        $region56: #{tpu_custom_call.1} parent=39 // pred_fallthru
          _
        %s959 = sand.u32 %s186, 1
        %s960 = scalar_lea.sflag [#allocation5], %s959
        %s961 = sand.u32 %s186, 1
        %s962 = smul.addr %s961, 256
        %s963 = scalar_lea.vmem [#allocation8], %s962
        // Predicated region
        $region57: #{tpu_custom_call.1} parent=39 // pred_check
          %p964 = pneg %p196
        $region58: #{tpu_custom_call.1} parent=39 // pred_check_branch
          %966 = sbr.rel (%p964) target = $region60
        $region59: #{tpu_custom_call.1} parent=39 // pred_region
          %s967 = smul.u32 32, %s28
          %s969 = ssub.s32 4096, 4096
          %970 = vsyncadd %s960, %s969
          %s971 = sadd.s32 %s29, %s967
          %s972 = smul.addr %s971, 128
          %s973 = scalar_lea.hbm %s5, %s972
          %s974 = sshll.u32 %s963, 4
          %s975 = int_to_ptr.vmem [resolvable:$true] %s974
          %980 = dma.vmem_to_hbm [thread:$0]  %s975, 4096, %s973, %s960, 128, 128, 8
        $region60: #{tpu_custom_call.1} parent=39 // pred_fallthru
          _
      $region40: #{tpu_custom_call.1} parent=5 // pred_fallthru
        _
      %p981 = scmp.le.s32.totalorder 2, %s18
      // Predicated region
      $region61: #{tpu_custom_call.1} parent=5 // pred_check
        %p982 = pneg %p981
      $region62: #{tpu_custom_call.1} parent=5 // pred_check_branch
        %984 = sbr.rel (%p982) target = $region64
      $region63: #{tpu_custom_call.1} parent=5 // pred_region
        %s985 = ssub.s32 %s18, 2
        // Predicated region
        $region65: #{tpu_custom_call.1} parent=63 // pred_check
          %p986 = pneg %p202
        $region66: #{tpu_custom_call.1} parent=63 // pred_check_branch
          %988 = sbr.rel (%p986) target = $region68
        $region67: #{tpu_custom_call.1} parent=63 // pred_region
          %s989 = sand.u32 %s187, 1
          %s990 = scalar_lea.sflag [#allocation5], %s989
          %s991 = sand.u32 %s187, 1
          %s992 = smul.addr %s991, 256
          %s993 = scalar_lea.vmem [#allocation8], %s992
          %994 = dma.done %s990, 4096
        $region68: #{tpu_custom_call.1} parent=63 // pred_fallthru
          _
      $region64: #{tpu_custom_call.1} parent=5 // pred_fallthru
        _
    $region6: #{tpu_custom_call.1} parent=1 // loop_footer
      %s22 = sadd.s32 1, %s18
    $region7: #{tpu_custom_call.1} parent=1 // loop_footer_branch
      %17 = sbr.rel target = $region3
    $region8: #{tpu_custom_call.1} parent=1 // loop_exit
      _
    %995 = vsyncpa [#allocation4], 1
    %s996 = scalar_lea.sflag [#allocation4], 1
    %997 = vsyncpa %s996, 1
    %998 = vsyncpa [#allocation7], 1
    %999 = vsyncpa [#allocation5], 1
    %s1000 = scalar_lea.sflag [#allocation5], 1
    %1001 = vsyncpa %s1000, 1

</llo_original>
